<compile_context>
chip_gen: v5e
topology: v5e:2x2
jax: 0.10.0
libtpu: 0.0.40
codegen_flags: <defaults>
</compile_context>

<pallas_src>
import functools

import numpy as np
import jax
import jax.numpy as jnp
from jax.experimental import pallas as pl
from jax.experimental.pallas import tpu as pltpu


def _hsl1_kernel(feat_ref, gt_ref, out_ref, err_ref, acc_cnt_ref, acc_sse_ref,
                 *, max_label, groups, unroll_labels):
    # feat_ref, gt_ref : (1, TS, 128) f32 VMEM blocks (one batch-row slice).
    # out_ref          : (1, 1, L) f32 per-batch, per-label loss contributions.
    # err_ref          : (TS, 128) f32 scratch holding (feat - gt)^2.
    # acc_*_ref        : (L, 8, 128) f32 per-label vreg-shaped accumulators.
    n = pl.program_id(1)

    @pl.when(n == 0)
    def _init():
        acc_cnt_ref[...] = jnp.zeros_like(acc_cnt_ref)
        acc_sse_ref[...] = jnp.zeros_like(acc_sse_ref)

    # Hoisted squared error: identical to (feat - label)^2 on masked elements.
    d = feat_ref[0] - gt_ref[0]
    err_ref[...] = d * d

    def accumulate(idx, lbl):
        # Accumulators live in registers for the whole group loop: VMEM
        # traffic is 2 loads + 2 stores per label per *tile*, not per group.
        pc = acc_cnt_ref[idx]                                  # (8, 128)
        ps = acc_sse_ref[idx]                                  # (8, 128)
        for g in range(groups):
            lo = g * 8
            gg = gt_ref[0, lo:lo + 8, :]                       # (8, 128)
            m = (gg == lbl).astype(jnp.float32)                # one mask, reused
            pc = pc + m                                        # pure VALU adds,
            ps = ps + m * err_ref[lo:lo + 8, :]                # no XLU in hot loop
        acc_cnt_ref[idx] = pc
        acc_sse_ref[idx] = ps

    if unroll_labels:
        # Static unroll: full scheduler visibility across labels.
        for idx in range(max_label):
            accumulate(idx, float(idx + 1))
    else:
        # Bounded code size for large label counts / large tiles.
        @pl.loop(1, max_label + 1)
        def _lab(i):
            accumulate(i - 1, i.astype(jnp.float32))

    @pl.when(n == pl.num_programs(1) - 1)
    def _finalize():
        # Single deferred cross-lane/sublane reduction per batch row (XLU,
        # off the hot path).
        cnt = jnp.sum(jnp.sum(acc_cnt_ref[...], axis=-1), axis=-1)   # (L,)
        sse = jnp.sum(jnp.sum(acc_sse_ref[...], axis=-1), axis=-1)   # (L,)
        contrib = jnp.where(cnt > 0.0, sse / jnp.maximum(cnt, 1.0), 0.0)
        out_ref[0, 0, :] = contrib


def hsl1_loss(featmap, gt, ignore_label, *, block_sublanes=1024):
    """Pallas implementation of HSL1Loss.forward.

    featmap, gt: (B, C, H, W); only channel 0 is used (as in PyTorch).
    """
    assert featmap.shape[1:] == gt.shape[1:]
    assert block_sublanes % 8 == 0
    B = featmap.shape[0]
    L = int(ignore_label) - 1
    assert L >= 1, "ignore_label must be >= 2"

    feat2d = featmap[:, 0].reshape(B, -1).astype(jnp.float32)
    gt2d = gt[:, 0].reshape(B, -1).astype(jnp.float32)
    N = feat2d.shape[1]

    # Arrange each batch row as (G, 128) so 128 maps to lanes and the tile's
    # sublane count TS is fully packed; pad with gt=0 (never equals labels>=1).
    G = -(-N // 128)
    if G <= block_sublanes:
        TS = ((G + 7) // 8) * 8
    else:
        TS = block_sublanes
    G_pad = ((G + TS - 1) // TS) * TS
    N_pad = G_pad * 128
    if N_pad != N:
        pad = N_pad - N
        feat2d = jnp.pad(feat2d, ((0, 0), (0, pad)))
        gt2d = jnp.pad(gt2d, ((0, 0), (0, pad)))
    feat3d = feat2d.reshape(B, G_pad, 128)
    gt3d = gt2d.reshape(B, G_pad, 128)

    nblk = G_pad // TS
    groups = TS // 8
    # Static unroll only while total unrolled body count stays modest; beyond
    # that a dynamic label loop keeps compile time / code size bounded.
    unroll_labels = (L * groups) <= 256
    kernel = functools.partial(_hsl1_kernel, max_label=L, groups=groups,
                               unroll_labels=unroll_labels)

    out = pl.pallas_call(
        kernel,
        out_shape=jax.ShapeDtypeStruct((B, 1, L), jnp.float32),
        grid_spec=pltpu.PrefetchScalarGridSpec(
            num_scalar_prefetch=0,
            grid=(B, nblk),
            in_specs=[
                pl.BlockSpec((1, TS, 128), lambda b, n: (b, n, 0)),
                pl.BlockSpec((1, TS, 128), lambda b, n: (b, n, 0)),
            ],
            out_specs=pl.BlockSpec((1, 1, L), lambda b, n: (b, 0, 0)),
            scratch_shapes=[
                pltpu.VMEM((TS, 128), jnp.float32),      # hoisted (feat-gt)^2
                pltpu.VMEM((L, 8, 128), jnp.float32),    # per-label count partials
                pltpu.VMEM((L, 8, 128), jnp.float32),    # per-label sse partials
            ],
        ),
        compiler_params=pltpu.CompilerParams(
            dimension_semantics=("parallel", "arbitrary")),
    )(feat3d, gt3d)

    return jnp.sum(out) / jnp.float32(B)


def _reference_loss(featmap, gt, ignore_label):
    """Pure-numpy transcription of the PyTorch forward (for verification)."""
    featmap = np.asarray(featmap, dtype=np.float64)
    gt = np.asarray(gt, dtype=np.float64)
    B = featmap.shape[0]
    C = int(gt[gt < ignore_label].max())
    loss = 0.0
    for b in range(B):
        bfeat = featmap[b, 0].reshape(-1)
        bgt = gt[b, 0].reshape(-1)
        loss_b = 0.0
        for i in range(1, C + 1):
            m = bgt == i
            if m.sum() == 0:
                continue
            loss_b += np.mean((bfeat[m] - bgt[m]) ** 2)
        loss += loss_b
    return loss / B


if __name__ == "__main__":
    key = jax.random.PRNGKey(0)
    k1, k2 = jax.random.split(key)

    B, Ch, H, W = 2, 4, 16, 16
    ignore_label = 8

    # Integer-valued instance labels 0..5, with a band of ignore_label pixels.
    gt = jax.random.randint(k1, (B, Ch, H, W), 0, 6).astype(jnp.float32)
    gt = gt.at[:, :, :2, :].set(float(ignore_label))
    featmap = gt + 0.1 * jax.random.normal(k2, (B, Ch, H, W), dtype=jnp.float32)

    loss = hsl1_loss(featmap, gt, ignore_label)
    loss = jax.block_until_ready(loss)

    ref = _reference_loss(featmap, gt, ignore_label)
    assert abs(float(loss) - float(ref)) <= 1e-4 * max(1.0, abs(float(ref))), (
        float(loss), float(ref))

    print("KERNEL_OK")
</pallas_src>

<mosaic_0001>
module attributes {stable_mosaic.version = 11 : i64} {
  func.func @_hsl1_kernel(%arg0: i32, %arg1: i32, %arg2: memref<1x8x128xf32, #tpu.memory_space<vmem>>, %arg3: memref<1x8x128xf32, #tpu.memory_space<vmem>>, %arg4: memref<1x1x7xf32, #tpu.memory_space<vmem>>, %arg5: memref<8x128xf32, #tpu.memory_space<vmem>>, %arg6: memref<7x8x128xf32, #tpu.memory_space<vmem>>, %arg7: memref<7x8x128xf32, #tpu.memory_space<vmem>>) attributes {dimension_semantics = [#tpu.dimension_semantics<parallel>, #tpu.dimension_semantics<arbitrary>], iteration_bounds = array<i64: 2, 1>, scalar_prefetch = 0 : i64, scratch_operands = 3 : i64, tpu.core_type = #tpu.core_type<tc>, window_params = [{transform_indices = @transform_0, window_bounds = array<i64: 1, 8, 128>}, {transform_indices = @transform_1, window_bounds = array<i64: 1, 8, 128>}, {transform_indices = @transform_2, window_bounds = array<i64: 1, 1, 7>}]} {
    %c0_i32 = arith.constant 0 : i32
    %0 = arith.cmpi eq, %arg1, %c0_i32 : i32
    %1 = arith.extui %0 : i1 to i32
    %c0_i32_0 = arith.constant 0 : i32
    %2 = arith.cmpi ne, %1, %c0_i32_0 : i32
    scf.if %2 {
      %cst_129 = arith.constant 0.000000e+00 : f32
      %153 = vector.broadcast %cst_129 : f32 to vector<7x8x128xf32>
      %c0_130 = arith.constant 0 : index
      %c0_131 = arith.constant 0 : index
      %c0_132 = arith.constant 0 : index
      %154 = vector.load %arg6[%c0_130, %c0_131, %c0_132] : memref<7x8x128xf32, #tpu.memory_space<vmem>>, vector<7x8x128xf32>
      tpu.vector_store %arg6[%c0_130, %c0_131, %c0_132], %153 {strides = array<i32>} : memref<7x8x128xf32, #tpu.memory_space<vmem>>, vector<7x8x128xf32>,
      %cst_133 = arith.constant 0.000000e+00 : f32
      %155 = vector.broadcast %cst_133 : f32 to vector<7x8x128xf32>
      %c0_134 = arith.constant 0 : index
      %c0_135 = arith.constant 0 : index
      %c0_136 = arith.constant 0 : index
      %156 = vector.load %arg7[%c0_134, %c0_135, %c0_136] : memref<7x8x128xf32, #tpu.memory_space<vmem>>, vector<7x8x128xf32>
      tpu.vector_store %arg7[%c0_134, %c0_135, %c0_136], %155 {strides = array<i32>} : memref<7x8x128xf32, #tpu.memory_space<vmem>>, vector<7x8x128xf32>,
    } else {
    }
    %c0 = arith.constant 0 : index
    %c0_1 = arith.constant 0 : index
    %c0_2 = arith.constant 0 : index
    %3 = vector.load %arg2[%c0, %c0_1, %c0_2] : memref<1x8x128xf32, #tpu.memory_space<vmem>>, vector<1x8x128xf32>
    %4 = vector.shape_cast %3 : vector<1x8x128xf32> to vector<8x128xf32>
    %c0_3 = arith.constant 0 : index
    %c0_4 = arith.constant 0 : index
    %c0_5 = arith.constant 0 : index
    %5 = vector.load %arg3[%c0_3, %c0_4, %c0_5] : memref<1x8x128xf32, #tpu.memory_space<vmem>>, vector<1x8x128xf32>
    %6 = vector.shape_cast %5 : vector<1x8x128xf32> to vector<8x128xf32>
    %7 = arith.subf %4, %6 : vector<8x128xf32>
    %8 = arith.mulf %7, %7 : vector<8x128xf32>
    %c0_6 = arith.constant 0 : index
    %c0_7 = arith.constant 0 : index
    %9 = vector.load %arg5[%c0_6, %c0_7] : memref<8x128xf32, #tpu.memory_space<vmem>>, vector<8x128xf32>
    tpu.vector_store %arg5[%c0_6, %c0_7], %8 {strides = array<i32>} : memref<8x128xf32, #tpu.memory_space<vmem>>, vector<8x128xf32>,
    %c0_8 = arith.constant 0 : index
    %c0_9 = arith.constant 0 : index
    %c0_10 = arith.constant 0 : index
    %10 = vector.load %arg6[%c0_8, %c0_9, %c0_10] : memref<7x8x128xf32, #tpu.memory_space<vmem>>, vector<1x8x128xf32>
    %11 = vector.shape_cast %10 : vector<1x8x128xf32> to vector<8x128xf32>
    %c0_11 = arith.constant 0 : index
    %c0_12 = arith.constant 0 : index
    %c0_13 = arith.constant 0 : index
    %12 = vector.load %arg7[%c0_11, %c0_12, %c0_13] : memref<7x8x128xf32, #tpu.memory_space<vmem>>, vector<1x8x128xf32>
    %13 = vector.shape_cast %12 : vector<1x8x128xf32> to vector<8x128xf32>
    %c0_14 = arith.constant 0 : index
    %c0_15 = arith.constant 0 : index
    %c0_16 = arith.constant 0 : index
    %14 = vector.load %arg3[%c0_14, %c0_15, %c0_16] : memref<1x8x128xf32, #tpu.memory_space<vmem>>, vector<1x8x128xf32>
    %15 = vector.shape_cast %14 : vector<1x8x128xf32> to vector<8x128xf32>
    %cst = arith.constant 1.000000e+00 : f32
    %16 = vector.broadcast %cst : f32 to vector<8x128xf32>
    %17 = arith.cmpf oeq, %15, %16 : vector<8x128xf32>
    %18 = arith.extui %17 : vector<8x128xi1> to vector<8x128xi32>
    %19 = arith.sitofp %18 : vector<8x128xi32> to vector<8x128xf32>
    %20 = arith.addf %11, %19 : vector<8x128xf32>
    %c0_17 = arith.constant 0 : index
    %c0_18 = arith.constant 0 : index
    %21 = vector.load %arg5[%c0_17, %c0_18] : memref<8x128xf32, #tpu.memory_space<vmem>>, vector<8x128xf32>
    %22 = arith.mulf %19, %21 : vector<8x128xf32>
    %23 = arith.addf %13, %22 : vector<8x128xf32>
    %c0_19 = arith.constant 0 : index
    %c0_20 = arith.constant 0 : index
    %c0_21 = arith.constant 0 : index
    %24 = vector.load %arg6[%c0_19, %c0_20, %c0_21] : memref<7x8x128xf32, #tpu.memory_space<vmem>>, vector<1x8x128xf32>
    %25 = vector.shape_cast %24 : vector<1x8x128xf32> to vector<8x128xf32>
    %26 = vector.shape_cast %20 : vector<8x128xf32> to vector<1x8x128xf32>
    tpu.vector_store %arg6[%c0_19, %c0_20, %c0_21], %26 {strides = array<i32>} : memref<7x8x128xf32, #tpu.memory_space<vmem>>, vector<1x8x128xf32>,
    %c0_22 = arith.constant 0 : index
    %c0_23 = arith.constant 0 : index
    %c0_24 = arith.constant 0 : index
    %27 = vector.load %arg7[%c0_22, %c0_23, %c0_24] : memref<7x8x128xf32, #tpu.memory_space<vmem>>, vector<1x8x128xf32>
    %28 = vector.shape_cast %27 : vector<1x8x128xf32> to vector<8x128xf32>
    %29 = vector.shape_cast %23 : vector<8x128xf32> to vector<1x8x128xf32>
    tpu.vector_store %arg7[%c0_22, %c0_23, %c0_24], %29 {strides = array<i32>} : memref<7x8x128xf32, #tpu.memory_space<vmem>>, vector<1x8x128xf32>,
    %c1 = arith.constant 1 : index
    %c0_25 = arith.constant 0 : index
    %c0_26 = arith.constant 0 : index
    %30 = vector.load %arg6[%c1, %c0_25, %c0_26] : memref<7x8x128xf32, #tpu.memory_space<vmem>>, vector<1x8x128xf32>
    %31 = vector.shape_cast %30 : vector<1x8x128xf32> to vector<8x128xf32>
    %c1_27 = arith.constant 1 : index
    %c0_28 = arith.constant 0 : index
    %c0_29 = arith.constant 0 : index
    %32 = vector.load %arg7[%c1_27, %c0_28, %c0_29] : memref<7x8x128xf32, #tpu.memory_space<vmem>>, vector<1x8x128xf32>
    %33 = vector.shape_cast %32 : vector<1x8x128xf32> to vector<8x128xf32>
    %c0_30 = arith.constant 0 : index
    %c0_31 = arith.constant 0 : index
    %c0_32 = arith.constant 0 : index
    %34 = vector.load %arg3[%c0_30, %c0_31, %c0_32] : memref<1x8x128xf32, #tpu.memory_space<vmem>>, vector<1x8x128xf32>
    %35 = vector.shape_cast %34 : vector<1x8x128xf32> to vector<8x128xf32>
    %cst_33 = arith.constant 2.000000e+00 : f32
    %36 = vector.broadcast %cst_33 : f32 to vector<8x128xf32>
    %37 = arith.cmpf oeq, %35, %36 : vector<8x128xf32>
    %38 = arith.extui %37 : vector<8x128xi1> to vector<8x128xi32>
    %39 = arith.sitofp %38 : vector<8x128xi32> to vector<8x128xf32>
    %40 = arith.addf %31, %39 : vector<8x128xf32>
    %c0_34 = arith.constant 0 : index
    %c0_35 = arith.constant 0 : index
    %41 = vector.load %arg5[%c0_34, %c0_35] : memref<8x128xf32, #tpu.memory_space<vmem>>, vector<8x128xf32>
    %42 = arith.mulf %39, %41 : vector<8x128xf32>
    %43 = arith.addf %33, %42 : vector<8x128xf32>
    %c1_36 = arith.constant 1 : index
    %c0_37 = arith.constant 0 : index
    %c0_38 = arith.constant 0 : index
    %44 = vector.load %arg6[%c1_36, %c0_37, %c0_38] : memref<7x8x128xf32, #tpu.memory_space<vmem>>, vector<1x8x128xf32>
    %45 = vector.shape_cast %44 : vector<1x8x128xf32> to vector<8x128xf32>
    %46 = vector.shape_cast %40 : vector<8x128xf32> to vector<1x8x128xf32>
    tpu.vector_store %arg6[%c1_36, %c0_37, %c0_38], %46 {strides = array<i32>} : memref<7x8x128xf32, #tpu.memory_space<vmem>>, vector<1x8x128xf32>,
    %c1_39 = arith.constant 1 : index
    %c0_40 = arith.constant 0 : index
    %c0_41 = arith.constant 0 : index
    %47 = vector.load %arg7[%c1_39, %c0_40, %c0_41] : memref<7x8x128xf32, #tpu.memory_space<vmem>>, vector<1x8x128xf32>
    %48 = vector.shape_cast %47 : vector<1x8x128xf32> to vector<8x128xf32>
    %49 = vector.shape_cast %43 : vector<8x128xf32> to vector<1x8x128xf32>
    tpu.vector_store %arg7[%c1_39, %c0_40, %c0_41], %49 {strides = array<i32>} : memref<7x8x128xf32, #tpu.memory_space<vmem>>, vector<1x8x128xf32>,
    %c2 = arith.constant 2 : index
    %c0_42 = arith.constant 0 : index
    %c0_43 = arith.constant 0 : index
    %50 = vector.load %arg6[%c2, %c0_42, %c0_43] : memref<7x8x128xf32, #tpu.memory_space<vmem>>, vector<1x8x128xf32>
    %51 = vector.shape_cast %50 : vector<1x8x128xf32> to vector<8x128xf32>
    %c2_44 = arith.constant 2 : index
    %c0_45 = arith.constant 0 : index
    %c0_46 = arith.constant 0 : index
    %52 = vector.load %arg7[%c2_44, %c0_45, %c0_46] : memref<7x8x128xf32, #tpu.memory_space<vmem>>, vector<1x8x128xf32>
    %53 = vector.shape_cast %52 : vector<1x8x128xf32> to vector<8x128xf32>
    %c0_47 = arith.constant 0 : index
    %c0_48 = arith.constant 0 : index
    %c0_49 = arith.constant 0 : index
    %54 = vector.load %arg3[%c0_47, %c0_48, %c0_49] : memref<1x8x128xf32, #tpu.memory_space<vmem>>, vector<1x8x128xf32>
    %55 = vector.shape_cast %54 : vector<1x8x128xf32> to vector<8x128xf32>
    %cst_50 = arith.constant 3.000000e+00 : f32
    %56 = vector.broadcast %cst_50 : f32 to vector<8x128xf32>
    %57 = arith.cmpf oeq, %55, %56 : vector<8x128xf32>
    %58 = arith.extui %57 : vector<8x128xi1> to vector<8x128xi32>
    %59 = arith.sitofp %58 : vector<8x128xi32> to vector<8x128xf32>
    %60 = arith.addf %51, %59 : vector<8x128xf32>
    %c0_51 = arith.constant 0 : index
    %c0_52 = arith.constant 0 : index
    %61 = vector.load %arg5[%c0_51, %c0_52] : memref<8x128xf32, #tpu.memory_space<vmem>>, vector<8x128xf32>
    %62 = arith.mulf %59, %61 : vector<8x128xf32>
    %63 = arith.addf %53, %62 : vector<8x128xf32>
    %c2_53 = arith.constant 2 : index
    %c0_54 = arith.constant 0 : index
    %c0_55 = arith.constant 0 : index
    %64 = vector.load %arg6[%c2_53, %c0_54, %c0_55] : memref<7x8x128xf32, #tpu.memory_space<vmem>>, vector<1x8x128xf32>
    %65 = vector.shape_cast %64 : vector<1x8x128xf32> to vector<8x128xf32>
    %66 = vector.shape_cast %60 : vector<8x128xf32> to vector<1x8x128xf32>
    tpu.vector_store %arg6[%c2_53, %c0_54, %c0_55], %66 {strides = array<i32>} : memref<7x8x128xf32, #tpu.memory_space<vmem>>, vector<1x8x128xf32>,
    %c2_56 = arith.constant 2 : index
    %c0_57 = arith.constant 0 : index
    %c0_58 = arith.constant 0 : index
    %67 = vector.load %arg7[%c2_56, %c0_57, %c0_58] : memref<7x8x128xf32, #tpu.memory_space<vmem>>, vector<1x8x128xf32>
    %68 = vector.shape_cast %67 : vector<1x8x128xf32> to vector<8x128xf32>
    %69 = vector.shape_cast %63 : vector<8x128xf32> to vector<1x8x128xf32>
    tpu.vector_store %arg7[%c2_56, %c0_57, %c0_58], %69 {strides = array<i32>} : memref<7x8x128xf32, #tpu.memory_space<vmem>>, vector<1x8x128xf32>,
    %c3 = arith.constant 3 : index
    %c0_59 = arith.constant 0 : index
    %c0_60 = arith.constant 0 : index
    %70 = vector.load %arg6[%c3, %c0_59, %c0_60] : memref<7x8x128xf32, #tpu.memory_space<vmem>>, vector<1x8x128xf32>
    %71 = vector.shape_cast %70 : vector<1x8x128xf32> to vector<8x128xf32>
    %c3_61 = arith.constant 3 : index
    %c0_62 = arith.constant 0 : index
    %c0_63 = arith.constant 0 : index
    %72 = vector.load %arg7[%c3_61, %c0_62, %c0_63] : memref<7x8x128xf32, #tpu.memory_space<vmem>>, vector<1x8x128xf32>
    %73 = vector.shape_cast %72 : vector<1x8x128xf32> to vector<8x128xf32>
    %c0_64 = arith.constant 0 : index
    %c0_65 = arith.constant 0 : index
    %c0_66 = arith.constant 0 : index
    %74 = vector.load %arg3[%c0_64, %c0_65, %c0_66] : memref<1x8x128xf32, #tpu.memory_space<vmem>>, vector<1x8x128xf32>
    %75 = vector.shape_cast %74 : vector<1x8x128xf32> to vector<8x128xf32>
    %cst_67 = arith.constant 4.000000e+00 : f32
    %76 = vector.broadcast %cst_67 : f32 to vector<8x128xf32>
    %77 = arith.cmpf oeq, %75, %76 : vector<8x128xf32>
    %78 = arith.extui %77 : vector<8x128xi1> to vector<8x128xi32>
    %79 = arith.sitofp %78 : vector<8x128xi32> to vector<8x128xf32>
    %80 = arith.addf %71, %79 : vector<8x128xf32>
    %c0_68 = arith.constant 0 : index
    %c0_69 = arith.constant 0 : index
    %81 = vector.load %arg5[%c0_68, %c0_69] : memref<8x128xf32, #tpu.memory_space<vmem>>, vector<8x128xf32>
    %82 = arith.mulf %79, %81 : vector<8x128xf32>
    %83 = arith.addf %73, %82 : vector<8x128xf32>
    %c3_70 = arith.constant 3 : index
    %c0_71 = arith.constant 0 : index
    %c0_72 = arith.constant 0 : index
    %84 = vector.load %arg6[%c3_70, %c0_71, %c0_72] : memref<7x8x128xf32, #tpu.memory_space<vmem>>, vector<1x8x128xf32>
    %85 = vector.shape_cast %84 : vector<1x8x128xf32> to vector<8x128xf32>
    %86 = vector.shape_cast %80 : vector<8x128xf32> to vector<1x8x128xf32>
    tpu.vector_store %arg6[%c3_70, %c0_71, %c0_72], %86 {strides = array<i32>} : memref<7x8x128xf32, #tpu.memory_space<vmem>>, vector<1x8x128xf32>,
    %c3_73 = arith.constant 3 : index
    %c0_74 = arith.constant 0 : index
    %c0_75 = arith.constant 0 : index
    %87 = vector.load %arg7[%c3_73, %c0_74, %c0_75] : memref<7x8x128xf32, #tpu.memory_space<vmem>>, vector<1x8x128xf32>
    %88 = vector.shape_cast %87 : vector<1x8x128xf32> to vector<8x128xf32>
    %89 = vector.shape_cast %83 : vector<8x128xf32> to vector<1x8x128xf32>
    tpu.vector_store %arg7[%c3_73, %c0_74, %c0_75], %89 {strides = array<i32>} : memref<7x8x128xf32, #tpu.memory_space<vmem>>, vector<1x8x128xf32>,
    %c4 = arith.constant 4 : index
    %c0_76 = arith.constant 0 : index
    %c0_77 = arith.constant 0 : index
    %90 = vector.load %arg6[%c4, %c0_76, %c0_77] : memref<7x8x128xf32, #tpu.memory_space<vmem>>, vector<1x8x128xf32>
    %91 = vector.shape_cast %90 : vector<1x8x128xf32> to vector<8x128xf32>
    %c4_78 = arith.constant 4 : index
    %c0_79 = arith.constant 0 : index
    %c0_80 = arith.constant 0 : index
    %92 = vector.load %arg7[%c4_78, %c0_79, %c0_80] : memref<7x8x128xf32, #tpu.memory_space<vmem>>, vector<1x8x128xf32>
    %93 = vector.shape_cast %92 : vector<1x8x128xf32> to vector<8x128xf32>
    %c0_81 = arith.constant 0 : index
    %c0_82 = arith.constant 0 : index
    %c0_83 = arith.constant 0 : index
    %94 = vector.load %arg3[%c0_81, %c0_82, %c0_83] : memref<1x8x128xf32, #tpu.memory_space<vmem>>, vector<1x8x128xf32>
    %95 = vector.shape_cast %94 : vector<1x8x128xf32> to vector<8x128xf32>
    %cst_84 = arith.constant 5.000000e+00 : f32
    %96 = vector.broadcast %cst_84 : f32 to vector<8x128xf32>
    %97 = arith.cmpf oeq, %95, %96 : vector<8x128xf32>
    %98 = arith.extui %97 : vector<8x128xi1> to vector<8x128xi32>
    %99 = arith.sitofp %98 : vector<8x128xi32> to vector<8x128xf32>
    %100 = arith.addf %91, %99 : vector<8x128xf32>
    %c0_85 = arith.constant 0 : index
    %c0_86 = arith.constant 0 : index
    %101 = vector.load %arg5[%c0_85, %c0_86] : memref<8x128xf32, #tpu.memory_space<vmem>>, vector<8x128xf32>
    %102 = arith.mulf %99, %101 : vector<8x128xf32>
    %103 = arith.addf %93, %102 : vector<8x128xf32>
    %c4_87 = arith.constant 4 : index
    %c0_88 = arith.constant 0 : index
    %c0_89 = arith.constant 0 : index
    %104 = vector.load %arg6[%c4_87, %c0_88, %c0_89] : memref<7x8x128xf32, #tpu.memory_space<vmem>>, vector<1x8x128xf32>
    %105 = vector.shape_cast %104 : vector<1x8x128xf32> to vector<8x128xf32>
    %106 = vector.shape_cast %100 : vector<8x128xf32> to vector<1x8x128xf32>
    tpu.vector_store %arg6[%c4_87, %c0_88, %c0_89], %106 {strides = array<i32>} : memref<7x8x128xf32, #tpu.memory_space<vmem>>, vector<1x8x128xf32>,
    %c4_90 = arith.constant 4 : index
    %c0_91 = arith.constant 0 : index
    %c0_92 = arith.constant 0 : index
    %107 = vector.load %arg7[%c4_90, %c0_91, %c0_92] : memref<7x8x128xf32, #tpu.memory_space<vmem>>, vector<1x8x128xf32>
    %108 = vector.shape_cast %107 : vector<1x8x128xf32> to vector<8x128xf32>
    %109 = vector.shape_cast %103 : vector<8x128xf32> to vector<1x8x128xf32>
    tpu.vector_store %arg7[%c4_90, %c0_91, %c0_92], %109 {strides = array<i32>} : memref<7x8x128xf32, #tpu.memory_space<vmem>>, vector<1x8x128xf32>,
    %c5 = arith.constant 5 : index
    %c0_93 = arith.constant 0 : index
    %c0_94 = arith.constant 0 : index
    %110 = vector.load %arg6[%c5, %c0_93, %c0_94] : memref<7x8x128xf32, #tpu.memory_space<vmem>>, vector<1x8x128xf32>
    %111 = vector.shape_cast %110 : vector<1x8x128xf32> to vector<8x128xf32>
    %c5_95 = arith.constant 5 : index
    %c0_96 = arith.constant 0 : index
    %c0_97 = arith.constant 0 : index
    %112 = vector.load %arg7[%c5_95, %c0_96, %c0_97] : memref<7x8x128xf32, #tpu.memory_space<vmem>>, vector<1x8x128xf32>
    %113 = vector.shape_cast %112 : vector<1x8x128xf32> to vector<8x128xf32>
    %c0_98 = arith.constant 0 : index
    %c0_99 = arith.constant 0 : index
    %c0_100 = arith.constant 0 : index
    %114 = vector.load %arg3[%c0_98, %c0_99, %c0_100] : memref<1x8x128xf32, #tpu.memory_space<vmem>>, vector<1x8x128xf32>
    %115 = vector.shape_cast %114 : vector<1x8x128xf32> to vector<8x128xf32>
    %cst_101 = arith.constant 6.000000e+00 : f32
    %116 = vector.broadcast %cst_101 : f32 to vector<8x128xf32>
    %117 = arith.cmpf oeq, %115, %116 : vector<8x128xf32>
    %118 = arith.extui %117 : vector<8x128xi1> to vector<8x128xi32>
    %119 = arith.sitofp %118 : vector<8x128xi32> to vector<8x128xf32>
    %120 = arith.addf %111, %119 : vector<8x128xf32>
    %c0_102 = arith.constant 0 : index
    %c0_103 = arith.constant 0 : index
    %121 = vector.load %arg5[%c0_102, %c0_103] : memref<8x128xf32, #tpu.memory_space<vmem>>, vector<8x128xf32>
    %122 = arith.mulf %119, %121 : vector<8x128xf32>
    %123 = arith.addf %113, %122 : vector<8x128xf32>
    %c5_104 = arith.constant 5 : index
    %c0_105 = arith.constant 0 : index
    %c0_106 = arith.constant 0 : index
    %124 = vector.load %arg6[%c5_104, %c0_105, %c0_106] : memref<7x8x128xf32, #tpu.memory_space<vmem>>, vector<1x8x128xf32>
    %125 = vector.shape_cast %124 : vector<1x8x128xf32> to vector<8x128xf32>
    %126 = vector.shape_cast %120 : vector<8x128xf32> to vector<1x8x128xf32>
    tpu.vector_store %arg6[%c5_104, %c0_105, %c0_106], %126 {strides = array<i32>} : memref<7x8x128xf32, #tpu.memory_space<vmem>>, vector<1x8x128xf32>,
    %c5_107 = arith.constant 5 : index
    %c0_108 = arith.constant 0 : index
    %c0_109 = arith.constant 0 : index
    %127 = vector.load %arg7[%c5_107, %c0_108, %c0_109] : memref<7x8x128xf32, #tpu.memory_space<vmem>>, vector<1x8x128xf32>
    %128 = vector.shape_cast %127 : vector<1x8x128xf32> to vector<8x128xf32>
    %129 = vector.shape_cast %123 : vector<8x128xf32> to vector<1x8x128xf32>
    tpu.vector_store %arg7[%c5_107, %c0_108, %c0_109], %129 {strides = array<i32>} : memref<7x8x128xf32, #tpu.memory_space<vmem>>, vector<1x8x128xf32>,
    %c6 = arith.constant 6 : index
    %c0_110 = arith.constant 0 : index
    %c0_111 = arith.constant 0 : index
    %130 = vector.load %arg6[%c6, %c0_110, %c0_111] : memref<7x8x128xf32, #tpu.memory_space<vmem>>, vector<1x8x128xf32>
    %131 = vector.shape_cast %130 : vector<1x8x128xf32> to vector<8x128xf32>
    %c6_112 = arith.constant 6 : index
    %c0_113 = arith.constant 0 : index
    %c0_114 = arith.constant 0 : index
    %132 = vector.load %arg7[%c6_112, %c0_113, %c0_114] : memref<7x8x128xf32, #tpu.memory_space<vmem>>, vector<1x8x128xf32>
    %133 = vector.shape_cast %132 : vector<1x8x128xf32> to vector<8x128xf32>
    %c0_115 = arith.constant 0 : index
    %c0_116 = arith.constant 0 : index
    %c0_117 = arith.constant 0 : index
    %134 = vector.load %arg3[%c0_115, %c0_116, %c0_117] : memref<1x8x128xf32, #tpu.memory_space<vmem>>, vector<1x8x128xf32>
    %135 = vector.shape_cast %134 : vector<1x8x128xf32> to vector<8x128xf32>
    %cst_118 = arith.constant 7.000000e+00 : f32
    %136 = vector.broadcast %cst_118 : f32 to vector<8x128xf32>
    %137 = arith.cmpf oeq, %135, %136 : vector<8x128xf32>
    %138 = arith.extui %137 : vector<8x128xi1> to vector<8x128xi32>
    %139 = arith.sitofp %138 : vector<8x128xi32> to vector<8x128xf32>
    %140 = arith.addf %131, %139 : vector<8x128xf32>
    %c0_119 = arith.constant 0 : index
    %c0_120 = arith.constant 0 : index
    %141 = vector.load %arg5[%c0_119, %c0_120] : memref<8x128xf32, #tpu.memory_space<vmem>>, vector<8x128xf32>
    %142 = arith.mulf %139, %141 : vector<8x128xf32>
    %143 = arith.addf %133, %142 : vector<8x128xf32>
    %c6_121 = arith.constant 6 : index
    %c0_122 = arith.constant 0 : index
    %c0_123 = arith.constant 0 : index
    %144 = vector.load %arg6[%c6_121, %c0_122, %c0_123] : memref<7x8x128xf32, #tpu.memory_space<vmem>>, vector<1x8x128xf32>
    %145 = vector.shape_cast %144 : vector<1x8x128xf32> to vector<8x128xf32>
    %146 = vector.shape_cast %140 : vector<8x128xf32> to vector<1x8x128xf32>
    tpu.vector_store %arg6[%c6_121, %c0_122, %c0_123], %146 {strides = array<i32>} : memref<7x8x128xf32, #tpu.memory_space<vmem>>, vector<1x8x128xf32>,
    %c6_124 = arith.constant 6 : index
    %c0_125 = arith.constant 0 : index
    %c0_126 = arith.constant 0 : index
    %147 = vector.load %arg7[%c6_124, %c0_125, %c0_126] : memref<7x8x128xf32, #tpu.memory_space<vmem>>, vector<1x8x128xf32>
    %148 = vector.shape_cast %147 : vector<1x8x128xf32> to vector<8x128xf32>
    %149 = vector.shape_cast %143 : vector<8x128xf32> to vector<1x8x128xf32>
    tpu.vector_store %arg7[%c6_124, %c0_125, %c0_126], %149 {strides = array<i32>} : memref<7x8x128xf32, #tpu.memory_space<vmem>>, vector<1x8x128xf32>,
    %c0_i32_127 = arith.constant 0 : i32
    %150 = arith.cmpi eq, %arg1, %c0_i32_127 : i32
    %151 = arith.extui %150 : i1 to i32
    %c0_i32_128 = arith.constant 0 : i32
    %152 = arith.cmpi ne, %151, %c0_i32_128 : i32
    scf.if %152 {
      %c0_129 = arith.constant 0 : index
      %c0_130 = arith.constant 0 : index
      %c0_131 = arith.constant 0 : index
      %153 = vector.load %arg6[%c0_129, %c0_130, %c0_131] : memref<7x8x128xf32, #tpu.memory_space<vmem>>, vector<7x8x128xf32>
      %cst_132 = arith.constant dense<0.000000e+00> : vector<7x8xf32>
      %154 = vector.multi_reduction <add>, %153, %cst_132 [2] : vector<7x8x128xf32> to vector<7x8xf32>
      %cst_133 = arith.constant dense<0.000000e+00> : vector<7xf32>
      %155 = vector.multi_reduction <add>, %154, %cst_133 [1] : vector<7x8xf32> to vector<7xf32>
      %c0_134 = arith.constant 0 : index
      %c0_135 = arith.constant 0 : index
      %c0_136 = arith.constant 0 : index
      %156 = vector.load %arg7[%c0_134, %c0_135, %c0_136] : memref<7x8x128xf32, #tpu.memory_space<vmem>>, vector<7x8x128xf32>
      %cst_137 = arith.constant dense<0.000000e+00> : vector<7x8xf32>
      %157 = vector.multi_reduction <add>, %156, %cst_137 [2] : vector<7x8x128xf32> to vector<7x8xf32>
      %cst_138 = arith.constant dense<0.000000e+00> : vector<7xf32>
      %158 = vector.multi_reduction <add>, %157, %cst_138 [1] : vector<7x8xf32> to vector<7xf32>
      %cst_139 = arith.constant 0.000000e+00 : f32
      %159 = vector.broadcast %cst_139 : f32 to vector<7xf32>
      %160 = arith.cmpf ogt, %155, %159 : vector<7xf32>
      %cst_140 = arith.constant 1.000000e+00 : f32
      %161 = vector.broadcast %cst_140 : f32 to vector<7xf32>
      %162 = arith.maximumf %155, %161 : vector<7xf32>
      %163 = arith.divf %158, %162 : vector<7xf32>
      %cst_141 = arith.constant 0.000000e+00 : f32
      %164 = vector.broadcast %cst_141 : f32 to vector<7xf32>
      %165 = arith.select %160, %163, %164 : vector<7xi1>, vector<7xf32>
      %c0_142 = arith.constant 0 : index
      %c0_143 = arith.constant 0 : index
      %c0_144 = arith.constant 0 : index
      %166 = vector.load %arg4[%c0_142, %c0_143, %c0_144] : memref<1x1x7xf32, #tpu.memory_space<vmem>>, vector<1x1x7xf32>
      %167 = vector.shape_cast %166 : vector<1x1x7xf32> to vector<7xf32>
      %168 = vector.shape_cast %165 : vector<7xf32> to vector<1x1x7xf32>
      tpu.vector_store %arg4[%c0_142, %c0_143, %c0_144], %168 {strides = array<i32>} : memref<1x1x7xf32, #tpu.memory_space<vmem>>, vector<1x1x7xf32>,
    } else {
    }
    return
  }
  func.func @transform_0(%arg0: i32, %arg1: i32) -> (i32, i32, i32) {
    %c0_i32 = arith.constant 0 : i32
    %c0_i32_0 = arith.constant 0 : i32
    return %arg0, %arg1, %c0_i32 : i32, i32, i32
  }
  func.func @transform_1(%arg0: i32, %arg1: i32) -> (i32, i32, i32) {
    %c0_i32 = arith.constant 0 : i32
    %c0_i32_0 = arith.constant 0 : i32
    return %arg0, %arg1, %c0_i32 : i32, i32, i32
  }
  func.func @transform_2(%arg0: i32, %arg1: i32) -> (i32, i32, i32) {
    %c0_i32 = arith.constant 0 : i32
    %c0_i32_0 = arith.constant 0 : i32
    %c0_i32_1 = arith.constant 0 : i32
    return %arg0, %c0_i32, %c0_i32_0 : i32, i32, i32
  }
}

</mosaic_0001>

<llo_original>
// kernel: tpu_custom_call.1
$region0: #{tpu_custom_call.1}
  #allocation0 [shape = 'u32[]', space=smem, size = 0x4, offset = 0x4, fixed_abs, tag = 'smem constant byte address 0x4 - core index']
  #allocation1 [shape = 'u32[72,128]{1,0:T(1,128)}', space=vmem, size = 0x9000, scoped, tag = 'internal scratch']
  #allocation2 [shape = 'f32[8,128]{1,0:T(8,128)}', space=vmem, size = 0x1000, scoped, tag = 'scratch operand']
  #allocation3 [shape = 'f32[7,8,128]{2,1,0:T(8,128)}', space=vmem, size = 0x7000, scoped, tag = 'scratch operand']
  #allocation4 [shape = 'f32[7,8,128]{2,1,0:T(8,128)}', space=vmem, size = 0x7000, scoped, tag = 'scratch operand']
  %s0 = inlined_call_operand.hbm [shape: f32[2,8,128], index: 0, kind: input, shape index: {}]
  %s1 = inlined_call_operand.hbm [shape: f32[2,8,128], index: 1, kind: input, shape index: {}]
  %s2 = inlined_call_operand.hbm [shape: f32[2,1,7], index: 2, kind: output, shape index: {}]
  %s3 = sld [smem:[#allocation0]]
  $region57: #{tpu_custom_call.1} parent=0
    _
  %s5 = ssub.s32 1, %s3
  %s6 = scalar_select 0, %s5, %s3
  $region1: #{tpu_custom_call.1} parent=0
    #allocation5 [shape = 'u8[8192]{0}', space=vmem, size = 0x2000, scoped, tag = 'input window, operand 0']
    #allocation6 [shape = 's32[2]{0}', space=sflag, size = 0x8, scoped, tag = 'scoped memory for tpu_custom_call.1']
    #allocation7 [shape = 's32[2]{0}', space=sflag, size = 0x8, scoped, tag = 'scoped memory for tpu_custom_call.1']
    #allocation8 [shape = 'u8[8192]{0}', space=vmem, size = 0x2000, scoped, tag = 'input window, operand 1']
    #allocation9 [shape = 's32[2]{0}', space=sflag, size = 0x8, scoped, tag = 'scoped memory for tpu_custom_call.1']
    #allocation10 [shape = 'u8[1024]{0}', space=vmem, size = 0x400, scoped, tag = 'output window, operand 0']
    %7 = vsyncpa [#allocation6], 0
    %s8 = scalar_lea.sflag [#allocation6], 1
    %9 = vsyncpa %s8, 0
    %10 = vsyncpa [#allocation9], 0
    %s11 = scalar_lea.sflag [#allocation9], 1
    %12 = vsyncpa %s11, 0
    %13 = vsyncpa [#allocation7], 0
    %s14 = scalar_lea.sflag [#allocation7], 1
    %15 = vsyncpa %s14, 0
    loop: start=0, step=1, limit=4
    $region2: #{tpu_custom_call.1} parent=1 // loop_pre_header
      _
    $region3: #{tpu_custom_call.1} parent=1 // loop_header
      %s17 = sphi 0, %s21
      %p18 = scmp.ge.s32.totalorder %s17, 4
      %s24 = sphi 0, %s36
      %s25 = sphi 0, %s32
      %s26 = sphi 0, %s24
      %s27 = sphi 0, %s25
      %s28 = sphi 0, %s26
      %s29 = sphi 0, %s27
      %s41 = sphi 0, %s43
      %s44 = sphi 0, %s41
      %s45 = sphi 0, %s44
      %s61 = sphi 0, %s45
      %s69 = sphi 0, %s71
      %s72 = sphi 0, %s69
      %s73 = sphi 0, %s72
      %s89 = sphi 0, %s73
      %s95 = sphi 0, %s97
      %s98 = sphi 0, %s95
      %s99 = sphi 0, %s98
      %s115 = sphi 0, %s99
    $region4: #{tpu_custom_call.1} parent=1 // loop_header_branch
      %20 = sbr.rel (%p18) target = $region8
    $region5: #{tpu_custom_call.1} parent=1 // loop_body
      %s22 = ssub.s32 %s17, 1
      %s23 = ssub.s32 %s17, 2
      %s30 = sadd.s32 1, %s25
      %p31 = scmp.ge.s32.totalorder %s30, 1
      %s32 = scalar_select %p31, 0, %s30
      %s33 = sadd.s32 1, %s24
      %s34 = scalar_select %p31, %s33, %s24
      %p35 = scmp.ge.s32.totalorder %s34, 2
      %s36 = scalar_select %p35, 0, %s34
      %s37 = ssub.s32 %s24, %s36
      %s38 = ssub.s32 %s25, %s32
      %s39 = sor.u32 %s37, %s38
      %p40 = scmp.eq.s32.totalorder %s39, 0
      %s42 = sadd.s32 %s41, 1
      %s43 = scalar_select %p40, %s41, %s42
      %p46 = pneg %p40
      %p47 = scmp.eq.s32.totalorder %s17, 1
      %p48 = por %p46, %p47
      %p49 = scmp.ne.s32.totalorder %s41, %s44
      %p50 = scmp.eq.s32.totalorder %s17, 0
      %p51 = por %p49, %p50
      %p52 = scmp.ne.s32.totalorder %s41, %s44
      %p53 = scmp.eq.s32.totalorder %s22, 1
      %p54 = por %p52, %p53
      %p55 = scmp.ne.s32.totalorder %s44, %s45
      %p56 = scmp.eq.s32.totalorder %s22, 0
      %p57 = por %p55, %p56
      %p58 = scmp.ne.s32.totalorder %s44, %s45
      %p59 = scmp.eq.s32.totalorder %s23, 1
      %p60 = por %p58, %p59
      %p62 = scmp.ne.s32.totalorder %s45, %s61
      %p63 = scmp.eq.s32.totalorder %s23, 0
      %p64 = por %p62, %p63
      %s65 = ssub.s32 %s24, %s36
      %s66 = ssub.s32 %s25, %s32
      %s67 = sor.u32 %s65, %s66
      %p68 = scmp.eq.s32.totalorder %s67, 0
      %s70 = sadd.s32 %s69, 1
      %s71 = scalar_select %p68, %s69, %s70
      %p74 = pneg %p68
      %p75 = scmp.eq.s32.totalorder %s17, 1
      %p76 = por %p74, %p75
      %p77 = scmp.ne.s32.totalorder %s69, %s72
      %p78 = scmp.eq.s32.totalorder %s17, 0
      %p79 = por %p77, %p78
      %p80 = scmp.ne.s32.totalorder %s69, %s72
      %p81 = scmp.eq.s32.totalorder %s22, 1
      %p82 = por %p80, %p81
      %p83 = scmp.ne.s32.totalorder %s72, %s73
      %p84 = scmp.eq.s32.totalorder %s22, 0
      %p85 = por %p83, %p84
      %p86 = scmp.ne.s32.totalorder %s72, %s73
      %p87 = scmp.eq.s32.totalorder %s23, 1
      %p88 = por %p86, %p87
      %p90 = scmp.ne.s32.totalorder %s73, %s89
      %p91 = scmp.eq.s32.totalorder %s23, 0
      %p92 = por %p90, %p91
      %s93 = ssub.s32 %s24, %s36
      %p94 = scmp.eq.s32.totalorder %s93, 0
      %s96 = sadd.s32 %s95, 1
      %s97 = scalar_select %p94, %s95, %s96
      %p100 = pneg %p94
      %p101 = scmp.eq.s32.totalorder %s17, 1
      %p102 = por %p100, %p101
      %p103 = scmp.ne.s32.totalorder %s95, %s98
      %p104 = scmp.eq.s32.totalorder %s17, 0
      %p105 = por %p103, %p104
      %p106 = scmp.ne.s32.totalorder %s95, %s98
      %p107 = scmp.eq.s32.totalorder %s22, 1
      %p108 = por %p106, %p107
      %p109 = scmp.ne.s32.totalorder %s98, %s99
      %p110 = scmp.eq.s32.totalorder %s22, 0
      %p111 = por %p109, %p110
      %p112 = scmp.ne.s32.totalorder %s98, %s99
      %p113 = scmp.eq.s32.totalorder %s23, 1
      %p114 = por %p112, %p113
      %p116 = scmp.ne.s32.totalorder %s99, %s115
      %p117 = scmp.eq.s32.totalorder %s23, 0
      %p118 = por %p116, %p117
      %p119 = scmp.le.s32.totalorder 1, %s17
      %p120 = scmp.lt.s32.totalorder %s17, 3
      %p121 = pnand %p119, %p120
      %p122 = pneg %p121
      // Predicated region
      $region9: #{tpu_custom_call.1} parent=5 // pred_check
        _
      $region10: #{tpu_custom_call.1} parent=5 // pred_check_branch
        %124 = sbr.rel (%p121) target = $region12
      $region11: #{tpu_custom_call.1} parent=5 // pred_region
        %s125 = ssub.s32 %s17, 1
      $region12: #{tpu_custom_call.1} parent=5 // pred_fallthru
        _
      %p126 = scmp.lt.s32.totalorder %s17, 2
      // Predicated region
      $region13: #{tpu_custom_call.1} parent=5 // pred_check
        %p127 = pneg %p126
      $region14: #{tpu_custom_call.1} parent=5 // pred_check_branch
        %129 = sbr.rel (%p127) target = $region16
      $region15: #{tpu_custom_call.1} parent=5 // pred_region
        // Predicated region
        $region17: #{tpu_custom_call.1} parent=15 // pred_check
          %p130 = pneg %p51
        $region18: #{tpu_custom_call.1} parent=15 // pred_check_branch
          %132 = sbr.rel (%p130) target = $region20
        $region19: #{tpu_custom_call.1} parent=15 // pred_region
          %s133 = sand.u32 %s41, 1
          %s134 = scalar_lea.sflag [#allocation6], %s133
          %s135 = sand.u32 %s41, 1
          %s136 = smul.addr %s135, 8
          %s137 = scalar_lea.vmem [#allocation5], %s136
          %139 = vsyncadd %s134, 0
          %s140 = sadd.s32 %s25, %s24
          %s141 = smul.addr %s140, 8
          %s142 = scalar_lea.hbm %s0, %s141
          %s144 = sshll.u32 %s142, 4
          %s145 = int_to_ptr.hbm [resolvable:$true] %s144
          %s146 = sshll.u32 %s137, 4
          %s147 = int_to_ptr.vmem [resolvable:$true] %s146
          %149 = dma.hbm_to_vmem [thread:$0]  %s145, 128, %s147, %s134
        $region20: #{tpu_custom_call.1} parent=15 // pred_fallthru
          _
        // Predicated region
        $region21: #{tpu_custom_call.1} parent=15 // pred_check
          %p150 = pneg %p79
        $region22: #{tpu_custom_call.1} parent=15 // pred_check_branch
          %152 = sbr.rel (%p150) target = $region24
        $region23: #{tpu_custom_call.1} parent=15 // pred_region
          %s153 = sand.u32 %s69, 1
          %s154 = scalar_lea.sflag [#allocation9], %s153
          %s155 = sand.u32 %s69, 1
          %s156 = smul.addr %s155, 8
          %s157 = scalar_lea.vmem [#allocation8], %s156
          %159 = vsyncadd %s154, 0
          %s160 = sadd.s32 %s25, %s24
          %s161 = smul.addr %s160, 8
          %s162 = scalar_lea.hbm %s1, %s161
          %s164 = sshll.u32 %s162, 4
          %s165 = int_to_ptr.hbm [resolvable:$true] %s164
          %s166 = sshll.u32 %s157, 4
          %s167 = int_to_ptr.vmem [resolvable:$true] %s166
          %169 = dma.hbm_to_vmem [thread:$0]  %s165, 128, %s167, %s154
        $region24: #{tpu_custom_call.1} parent=15 // pred_fallthru
          _
      $region16: #{tpu_custom_call.1} parent=5 // pred_fallthru
        _
      %p170 = scmp.le.s32.totalorder 1, %s17
      %p171 = scmp.lt.s32.totalorder %s17, 3
      %p172 = pnand %p170, %p171
      %p173 = pneg %p172
      // Predicated region
      $region25: #{tpu_custom_call.1} parent=5 // pred_check
        _
      $region26: #{tpu_custom_call.1} parent=5 // pred_check_branch
        %175 = sbr.rel (%p172) target = $region28
      $region27: #{tpu_custom_call.1} parent=5 // pred_region
        %s176 = ssub.s32 %s17, 1
        %s177 = sand.u32 %s44, 1
        %s178 = scalar_lea.sflag [#allocation6], %s177
        %s179 = sand.u32 %s44, 1
        %s180 = smul.addr %s179, 8
        %s181 = scalar_lea.vmem [#allocation5], %s180
        // Predicated region
        $region29: #{tpu_custom_call.1} parent=27 // pred_check
          %p182 = pneg %p57
        $region30: #{tpu_custom_call.1} parent=27 // pred_check_branch
          %184 = sbr.rel (%p182) target = $region32
        $region31: #{tpu_custom_call.1} parent=27 // pred_region
          %186 = dma.done %s178, 128
        $region32: #{tpu_custom_call.1} parent=27 // pred_fallthru
          _
        %s187 = sand.u32 %s72, 1
        %s188 = scalar_lea.sflag [#allocation9], %s187
        %s189 = sand.u32 %s72, 1
        %s190 = smul.addr %s189, 8
        %s191 = scalar_lea.vmem [#allocation8], %s190
        // Predicated region
        $region33: #{tpu_custom_call.1} parent=27 // pred_check
          %p192 = pneg %p85
        $region34: #{tpu_custom_call.1} parent=27 // pred_check_branch
          %194 = sbr.rel (%p192) target = $region36
        $region35: #{tpu_custom_call.1} parent=27 // pred_region
          %196 = dma.done %s188, 128
        $region36: #{tpu_custom_call.1} parent=27 // pred_fallthru
          _
        %s197 = sand.u32 %s44, 1
        %s198 = scalar_lea.sflag [#allocation6], %s197
        %s199 = sand.u32 %s44, 1
        %s200 = smul.addr %s199, 8
        %s201 = scalar_lea.vmem [#allocation5], %s200
        %p202 = pneg %p57
        %p203 = pneg %p54
        %s204 = sand.u32 %s72, 1
        %s205 = scalar_lea.sflag [#allocation9], %s204
        %s206 = sand.u32 %s72, 1
        %s207 = smul.addr %s206, 8
        %s208 = scalar_lea.vmem [#allocation8], %s207
        %p209 = pneg %p85
        %p210 = pneg %p82
        %p211 = pneg %p111
        %p212 = pneg %p108
        %s213 = sand.u32 %s98, 1
        %s214 = scalar_lea.sflag [#allocation7], %s213
        %s215 = sand.u32 %s98, 1
        %s216 = scalar_lea.vmem [#allocation10], %s215
        %p217 = scmp.eq.s32.totalorder %s27, 0
        // Predicated region
        $region37: #{tpu_custom_call.1} parent=27 // pred_check
          %p218 = pneg %p217
        $region38: #{tpu_custom_call.1} parent=27 // pred_check_branch
          %220 = sbr.rel (%p218) target = $region40
        $region39: #{tpu_custom_call.1} parent=27 // pred_region
          %221 = vst [vmem:[#allocation3] sm:$0xff] 0.0
          %222 = vst [vmem:[#allocation3 + $0x8] sm:$0xff] 0.0
          %223 = vst [vmem:[#allocation3 + $0x10] sm:$0xff] 0.0
          %224 = vst [vmem:[#allocation3 + $0x18] sm:$0xff] 0.0
          %225 = vst [vmem:[#allocation3 + $0x20] sm:$0xff] 0.0
          %226 = vst [vmem:[#allocation3 + $0x28] sm:$0xff] 0.0
          %227 = vst [vmem:[#allocation3 + $0x30] sm:$0xff] 0.0
          %228 = vst [vmem:[#allocation4] sm:$0xff] 0.0
          %229 = vst [vmem:[#allocation4 + $0x8] sm:$0xff] 0.0
          %230 = vst [vmem:[#allocation4 + $0x10] sm:$0xff] 0.0
          %231 = vst [vmem:[#allocation4 + $0x18] sm:$0xff] 0.0
          %232 = vst [vmem:[#allocation4 + $0x20] sm:$0xff] 0.0
          %233 = vst [vmem:[#allocation4 + $0x28] sm:$0xff] 0.0
          %234 = vst [vmem:[#allocation4 + $0x30] sm:$0xff] 0.0
        $region40: #{tpu_custom_call.1} parent=27 // pred_fallthru
          _
        %v235 = vld [vmem:[%s181] sm:$0xff]
        %v236 = vld [vmem:[%s191] sm:$0xff]
        %v237 = vsub.f32 %v235, %v236
        %v238 = vmul.f32 %v237, %v237
        %239 = vst [vmem:[#allocation2] sm:$0xff] %v238
        %v240 = vld [vmem:[#allocation3] sm:$0xff]
        %v241 = vld [vmem:[#allocation4] sm:$0xff]
        %v242 = vld [vmem:[%s191] sm:$0xff]
        %vm243 = vcmp.eq.f32.partialorder %v242, 1.0
        %v244 = vsel %vm243, 1, 0
        %v245 = vcvt.s32.f32 %v244
        %v246 = vadd.f32 %v240, %v245
        %v247 = vld [vmem:[#allocation2] sm:$0xff]
        %v248 = vmul.f32 %v245, %v247
        %v249 = vadd.f32 %v241, %v248
        %250 = vst [vmem:[#allocation3] sm:$0xff] %v246
        %251 = vst [vmem:[#allocation4] sm:$0xff] %v249
        %s252 = scalar_lea.vmem [#allocation3], 8
        %v253 = vld [vmem:[%s252] sm:$0xff]
        %s254 = scalar_lea.vmem [#allocation4], 8
        %v255 = vld [vmem:[%s254] sm:$0xff]
        %v256 = vld [vmem:[%s191] sm:$0xff]
        %vm257 = vcmp.eq.f32.partialorder %v256, 2.0
        %v258 = vsel %vm257, 1, 0
        %v259 = vcvt.s32.f32 %v258
        %v260 = vadd.f32 %v253, %v259
        %v261 = vld [vmem:[#allocation2] sm:$0xff]
        %v262 = vmul.f32 %v259, %v261
        %v263 = vadd.f32 %v255, %v262
        %264 = vst [vmem:[%s252] sm:$0xff] %v260
        %265 = vst [vmem:[%s254] sm:$0xff] %v263
        %s266 = scalar_lea.vmem [#allocation3], 16
        %v267 = vld [vmem:[%s266] sm:$0xff]
        %s268 = scalar_lea.vmem [#allocation4], 16
        %v269 = vld [vmem:[%s268] sm:$0xff]
        %v270 = vld [vmem:[%s191] sm:$0xff]
        %vm271 = vcmp.eq.f32.partialorder %v270, 3.0
        %v272 = vsel %vm271, 1, 0
        %v273 = vcvt.s32.f32 %v272
        %v274 = vadd.f32 %v267, %v273
        %v275 = vld [vmem:[#allocation2] sm:$0xff]
        %v276 = vmul.f32 %v273, %v275
        %v277 = vadd.f32 %v269, %v276
        %278 = vst [vmem:[%s266] sm:$0xff] %v274
        %279 = vst [vmem:[%s268] sm:$0xff] %v277
        %s280 = scalar_lea.vmem [#allocation3], 24
        %v281 = vld [vmem:[%s280] sm:$0xff]
        %s282 = scalar_lea.vmem [#allocation4], 24
        %v283 = vld [vmem:[%s282] sm:$0xff]
        %v284 = vld [vmem:[%s191] sm:$0xff]
        %vm285 = vcmp.eq.f32.partialorder %v284, 4.0
        %v286 = vsel %vm285, 1, 0
        %v287 = vcvt.s32.f32 %v286
        %v288 = vadd.f32 %v281, %v287
        %v289 = vld [vmem:[#allocation2] sm:$0xff]
        %v290 = vmul.f32 %v287, %v289
        %v291 = vadd.f32 %v283, %v290
        %292 = vst [vmem:[%s280] sm:$0xff] %v288
        %293 = vst [vmem:[%s282] sm:$0xff] %v291
        %s294 = scalar_lea.vmem [#allocation3], 32
        %v295 = vld [vmem:[%s294] sm:$0xff]
        %s296 = scalar_lea.vmem [#allocation4], 32
        %v297 = vld [vmem:[%s296] sm:$0xff]
        %v298 = vld [vmem:[%s191] sm:$0xff]
        %vm299 = vcmp.eq.f32.partialorder %v298, 5.0
        %v300 = vsel %vm299, 1, 0
        %v301 = vcvt.s32.f32 %v300
        %v302 = vadd.f32 %v295, %v301
        %v303 = vld [vmem:[#allocation2] sm:$0xff]
        %v304 = vmul.f32 %v301, %v303
        %v305 = vadd.f32 %v297, %v304
        %306 = vst [vmem:[%s294] sm:$0xff] %v302
        %307 = vst [vmem:[%s296] sm:$0xff] %v305
        %s308 = scalar_lea.vmem [#allocation3], 40
        %v309 = vld [vmem:[%s308] sm:$0xff]
        %s310 = scalar_lea.vmem [#allocation4], 40
        %v311 = vld [vmem:[%s310] sm:$0xff]
        %v312 = vld [vmem:[%s191] sm:$0xff]
        %vm313 = vcmp.eq.f32.partialorder %v312, 6.0
        %v314 = vsel %vm313, 1, 0
        %v315 = vcvt.s32.f32 %v314
        %v316 = vadd.f32 %v309, %v315
        %v317 = vld [vmem:[#allocation2] sm:$0xff]
        %v318 = vmul.f32 %v315, %v317
        %v319 = vadd.f32 %v311, %v318
        %320 = vst [vmem:[%s308] sm:$0xff] %v316
        %321 = vst [vmem:[%s310] sm:$0xff] %v319
        %s322 = scalar_lea.vmem [#allocation3], 48
        %v323 = vld [vmem:[%s322] sm:$0xff]
        %s324 = scalar_lea.vmem [#allocation4], 48
        %v325 = vld [vmem:[%s324] sm:$0xff]
        %v326 = vld [vmem:[%s191] sm:$0xff]
        %vm327 = vcmp.eq.f32.partialorder %v326, 7.0
        %v328 = vsel %vm327, 1, 0
        %v329 = vcvt.s32.f32 %v328
        %v330 = vadd.f32 %v323, %v329
        %v331 = vld [vmem:[#allocation2] sm:$0xff]
        %v332 = vmul.f32 %v329, %v331
        %v333 = vadd.f32 %v325, %v332
        %334 = vst [vmem:[%s322] sm:$0xff] %v330
        %335 = vst [vmem:[%s324] sm:$0xff] %v333
        // Predicated region
        $region41: #{tpu_custom_call.1} parent=27 // pred_check
          %p336 = pneg %p217
        $region42: #{tpu_custom_call.1} parent=27 // pred_check_branch
          %338 = sbr.rel (%p336) target = $region44
        $region43: #{tpu_custom_call.1} parent=27 // pred_region
          %v339 = vld [vmem:[#allocation3] sm:$0xff]
          %v340 = vld [vmem:[#allocation3 + $0x8] sm:$0xff]
          %v341 = vld [vmem:[#allocation3 + $0x10] sm:$0xff]
          %v342 = vld [vmem:[#allocation3 + $0x18] sm:$0xff]
          %v343 = vld [vmem:[#allocation3 + $0x20] sm:$0xff]
          %v344 = vld [vmem:[#allocation3 + $0x28] sm:$0xff]
          %v345 = vld [vmem:[#allocation3 + $0x30] sm:$0xff]
          %346 = vadd.xlane.f32.xlu0 %v339
          %v347 = vpop.xlane.xlu0 %346
          %348 = vadd.xlane.f32.xlu0 %v340
          %v349 = vpop.xlane.xlu0 %348
          %350 = vadd.xlane.f32.xlu0 %v341
          %v351 = vpop.xlane.xlu0 %350
          %352 = vadd.xlane.f32.xlu0 %v342
          %v353 = vpop.xlane.xlu0 %352
          %354 = vadd.xlane.f32.xlu0 %v343
          %v355 = vpop.xlane.xlu0 %354
          %356 = vadd.xlane.f32.xlu0 %v344
          %v357 = vpop.xlane.xlu0 %356
          %358 = vadd.xlane.f32.xlu0 %v345
          %v359 = vpop.xlane.xlu0 %358
          %v367 = vlaneseq
          %v368 = vand.u32 %v367, 127
          %v369 = vperm.slane %v347, %v368
          %v370 = vperm.slane %v349, %v368
          %v371 = vperm.slane %v351, %v368
          %v372 = vperm.slane %v353, %v368
          %v373 = vperm.slane %v355, %v368
          %v374 = vperm.slane %v357, %v368
          %v375 = vperm.slane %v359, %v368
          %vm376 = vcmask 1041409
          %v377 = vsel %vm376, %v370, %v369
          %vm378 = vcmask 1042434
          %v379 = vsel %vm378, %v371, %v377
          %vm380 = vcmask 1043459
          %v381 = vsel %vm380, %v372, %v379
          %vm382 = vcmask 1044484
          %v383 = vsel %vm382, %v373, %v381
          %vm384 = vcmask 1045509
          %v385 = vsel %vm384, %v374, %v383
          %vm386 = vcmask 1046534
          %v387 = vsel %vm386, %v375, %v385
          %vm389 = vcmask 63488
          %v390 = vsel %vm389, %v387, 0.0
          %391 = vadd.xlane.f32.xlu0 %v390
          %v392 = vpop.xlane.xlu0 %391
          %v393 = vld [vmem:[#allocation4] sm:$0xff]
          %v394 = vld [vmem:[#allocation4 + $0x8] sm:$0xff]
          %v395 = vld [vmem:[#allocation4 + $0x10] sm:$0xff]
          %v396 = vld [vmem:[#allocation4 + $0x18] sm:$0xff]
          %v397 = vld [vmem:[#allocation4 + $0x20] sm:$0xff]
          %v398 = vld [vmem:[#allocation4 + $0x28] sm:$0xff]
          %v399 = vld [vmem:[#allocation4 + $0x30] sm:$0xff]
          %400 = vadd.xlane.f32.xlu0 %v393
          %v401 = vpop.xlane.xlu0 %400
          %402 = vadd.xlane.f32.xlu0 %v394
          %v403 = vpop.xlane.xlu0 %402
          %404 = vadd.xlane.f32.xlu0 %v395
          %v405 = vpop.xlane.xlu0 %404
          %406 = vadd.xlane.f32.xlu0 %v396
          %v407 = vpop.xlane.xlu0 %406
          %408 = vadd.xlane.f32.xlu0 %v397
          %v409 = vpop.xlane.xlu0 %408
          %410 = vadd.xlane.f32.xlu0 %v398
          %v411 = vpop.xlane.xlu0 %410
          %412 = vadd.xlane.f32.xlu0 %v399
          %v413 = vpop.xlane.xlu0 %412
          %v421 = vperm.slane %v401, %v368
          %v422 = vperm.slane %v403, %v368
          %v423 = vperm.slane %v405, %v368
          %v424 = vperm.slane %v407, %v368
          %v425 = vperm.slane %v409, %v368
          %v426 = vperm.slane %v411, %v368
          %v427 = vperm.slane %v413, %v368
          %v428 = vsel %vm376, %v422, %v421
          %v429 = vsel %vm378, %v423, %v428
          %v430 = vsel %vm380, %v424, %v429
          %v431 = vsel %vm382, %v425, %v430
          %v432 = vsel %vm384, %v426, %v431
          %v433 = vsel %vm386, %v427, %v432
          %v435 = vsel %vm389, %v433, 0.0
          %436 = vadd.xlane.f32.xlu0 %v435
          %v437 = vpop.xlane.xlu0 %436
          %vm438 = vcmp.gt.f32.partialorder %v392, 0.0
          %v439 = vmax.f32 %v392, 1.0
          %v440 = vrcp.pop %v439
          %v441 = vmul.f32 %v439, %v440
          %v442 = vsub.f32 1.0, %v441
          %v443 = vmul.f32 %v440, %v442
          %v444 = vadd.f32 %v440, %v443
          %vm445 = vweird.f32 %v439
          %vm446 = vweird.f32 %v440
          %vm447 = vmor %vm445, %vm446
          %v448 = vsel %vm447, %v440, %v444
          %v449 = vand.u32 2147483647, %v439
          %vm450 = vcmp.eq.f32.partialorder %v449, 8.507059e+37
          %v451 = vand.u32 %v439, 2147483648
          %v452 = vor.u32 1.1754944e-38, %v451
          %v453 = vsel %vm450, %v452, %v448
          %v454 = vmul.f32 %v437, %v453
          %v455 = vsel %vm438, %v454, 0.0
          %v457 = vperm.slane %v455, %v368
          %vm459 = vcmask 49152
          %460 = vst.msk [vmem:[%s216] sm:$0x1] %vm459, %v457
        $region44: #{tpu_custom_call.1} parent=27 // pred_fallthru
          _
        %s461 = sand.u32 %s98, 1
        %s462 = scalar_lea.sflag [#allocation7], %s461
        %s463 = sand.u32 %s98, 1
        %s464 = scalar_lea.vmem [#allocation10], %s463
        // Predicated region
        $region45: #{tpu_custom_call.1} parent=27 // pred_check
          %p465 = pneg %p108
        $region46: #{tpu_custom_call.1} parent=27 // pred_check_branch
          %467 = sbr.rel (%p465) target = $region48
        $region47: #{tpu_custom_call.1} parent=27 // pred_region
          %469 = vsyncadd %s462, 0
          %s470 = scalar_lea.hbm %s2, %s26
          %s472 = sshll.u32 %s464, 4
          %s473 = int_to_ptr.vmem [resolvable:$true] %s472
          %s474 = sshll.u32 %s470, 4
          %s475 = int_to_ptr.hbm [resolvable:$true] %s474
          %477 = dma.vmem_to_hbm [thread:$0]  %s473, 16, %s475, %s462
        $region48: #{tpu_custom_call.1} parent=27 // pred_fallthru
          _
      $region28: #{tpu_custom_call.1} parent=5 // pred_fallthru
        _
      %p478 = scmp.le.s32.totalorder 2, %s17
      // Predicated region
      $region49: #{tpu_custom_call.1} parent=5 // pred_check
        %p479 = pneg %p478
      $region50: #{tpu_custom_call.1} parent=5 // pred_check_branch
        %481 = sbr.rel (%p479) target = $region52
      $region51: #{tpu_custom_call.1} parent=5 // pred_region
        %s482 = ssub.s32 %s17, 2
        // Predicated region
        $region53: #{tpu_custom_call.1} parent=51 // pred_check
          %p483 = pneg %p114
        $region54: #{tpu_custom_call.1} parent=51 // pred_check_branch
          %485 = sbr.rel (%p483) target = $region56
        $region55: #{tpu_custom_call.1} parent=51 // pred_region
          %s486 = sand.u32 %s99, 1
          %s487 = scalar_lea.sflag [#allocation7], %s486
          %s488 = sand.u32 %s99, 1
          %s489 = scalar_lea.vmem [#allocation10], %s488
          %491 = dma.done %s487, 16
        $region56: #{tpu_custom_call.1} parent=51 // pred_fallthru
          _
      $region52: #{tpu_custom_call.1} parent=5 // pred_fallthru
        _
    $region6: #{tpu_custom_call.1} parent=1 // loop_footer
      %s21 = sadd.s32 1, %s17
    $region7: #{tpu_custom_call.1} parent=1 // loop_footer_branch
      %16 = sbr.rel target = $region3
    $region8: #{tpu_custom_call.1} parent=1 // loop_exit
      _
    %492 = vsyncpa [#allocation6], 1
    %s493 = scalar_lea.sflag [#allocation6], 1
    %494 = vsyncpa %s493, 1
    %495 = vsyncpa [#allocation9], 1
    %s496 = scalar_lea.sflag [#allocation9], 1
    %497 = vsyncpa %s496, 1
    %498 = vsyncpa [#allocation7], 1
    %s499 = scalar_lea.sflag [#allocation7], 1
    %500 = vsyncpa %s499, 1

</llo_original>
